<compile_context>
chip_gen: v6e
topology: v6e:2x2x1
jax: 0.10.0
libtpu: 0.0.40
codegen_flags: <defaults>
</compile_context>

<pallas_src>
import functools

import jax
import jax.numpy as jnp
from jax.experimental import pallas as pl
from jax.experimental.pallas import tpu as pltpu


def _round_up(n, m):
    return ((n + m - 1) // m) * m


def _shared_conv1d_kernel(w_ref, b_ref, x_ref, o_ref, sext_ref, *,
                          kernel_size, dilation, tile_l, chunk_l):
    # w_ref:    (C_out, K)              VMEM (resident across the grid)
    # b_ref:    (C_out, 1)              VMEM
    # x_ref:    (1, C_in, tile_l)       VMEM, one (batch, time-tile) block
    # o_ref:    (1, C_out, tile_l)      VMEM
    # sext_ref: (1, halo_pad + tile_l)  f32 VMEM scratch, layout [..pad, carry | s]
    K = kernel_size
    P = (K - 1) * dilation                       # causal halo length
    halo_pad = _round_up(P, 128) if P > 0 else 0
    off = halo_pad - P                           # so `s` lands 128-lane aligned
    j = pl.program_id(1)                         # time-tile index (sequential)

    # Shared weight across input channels -> reduce over C_in once; the conv is
    # then K dilated FMAs against a single (1, tile_l) row.
    # TODO(synk): if large C_in ever makes this XLU/VALU-bound, switch to
    # ones(1, C_in) @ x on the MXU (optional per perf review).
    x = x_ref[0]                                                # (C_in, tile_l)
    s = jnp.sum(x.astype(jnp.float32), axis=0, keepdims=True)   # (1, tile_l)

    if P > 0:
        # Causal zero padding for times < 0, kept in VMEM (no HBM pad copy).
        @pl.when(j == 0)
        def _init_carry():
            sext_ref[:, off:halo_pad] = jnp.zeros((1, P), jnp.float32)
        sext_ref[:, halo_pad:] = s               # 128-aligned store
    else:
        sext_ref[...] = s

    w = w_ref[...].astype(jnp.float32)           # (C_out, K)
    bias = b_ref[...].astype(jnp.float32)        # (C_out, 1)
    c_out = w.shape[0]
    bias_b = jnp.broadcast_to(bias, (c_out, chunk_l))   # hoisted out of loop

    # Chunked tap accumulation: per chunk the accumulator is a bounded
    # (C_out, cw) f32 block in vregs; o_ref is stored exactly once per chunk.
    for base in range(0, tile_l, chunk_l):       # static trip count, unrolled
        cw = min(chunk_l, tile_l - base)
        acc = bias_b if cw == chunk_l else jnp.broadcast_to(bias, (c_out, cw))
        for k in range(K):
            start = off + base + k * dilation    # static slice start
            win = sext_ref[:, start:start + cw]             # (1, cw)
            acc = acc + w[:, k:k + 1] * win                 # VPU broadcast FMA
        o_ref[0, :, base:base + cw] = acc.astype(o_ref.dtype)

    if P > 0:
        # Carry the channel sums of the last P samples to the next time tile of
        # the same batch row (next step along the sequential grid axis).
        sext_ref[:, off:halo_pad] = sext_ref[:, halo_pad + tile_l - P:
                                             halo_pad + tile_l]


def shared_param_conv1d(x, shared_weight, bias, *, dilation=1,
                        tile_l=512, chunk_l=128):
    """x: (B, C_in, L); shared_weight: (C_out, 1, K); bias: (C_out,) -> (B, C_out, L)."""
    B, C_in, L = x.shape
    C_out, _, K = shared_weight.shape
    P = (K - 1) * dilation
    halo_pad = _round_up(P, 128) if P > 0 else 0

    # Lane-dense tiling: chunk/tile are multiples of 128, unless one full-extent
    # tile (always a legal block shape) already covers L.
    chunk_l = _round_up(max(chunk_l, 128), 128)
    tile_l = _round_up(max(tile_l, chunk_l), chunk_l)
    if L <= tile_l:
        tile_l = L                    # single full-dim tile
        chunk_l = min(chunk_l, tile_l)
    n_t = pl.cdiv(L, tile_l)

    w2d = shared_weight[:, 0, :]                  # (C_out, K)
    b2d = bias.reshape(C_out, 1)                  # (C_out, 1)

    kernel = functools.partial(
        _shared_conv1d_kernel,
        kernel_size=K, dilation=dilation, tile_l=tile_l, chunk_l=chunk_l)

    return pl.pallas_call(
        kernel,
        out_shape=jax.ShapeDtypeStruct((B, C_out, L), x.dtype),
        grid_spec=pltpu.PrefetchScalarGridSpec(
            num_scalar_prefetch=0,
            grid=(B, n_t),                        # time tiles innermost (carry)
            in_specs=[
                pl.BlockSpec((C_out, K), lambda b, j: (0, 0)),    # weights
                pl.BlockSpec((C_out, 1), lambda b, j: (0, 0)),    # bias
                pl.BlockSpec((1, C_in, tile_l), lambda b, j: (b, 0, j)),
            ],
            out_specs=pl.BlockSpec((1, C_out, tile_l), lambda b, j: (b, 0, j)),
            scratch_shapes=[pltpu.VMEM((1, halo_pad + tile_l), jnp.float32)],
        ),
        compiler_params=pltpu.CompilerParams(
            # Batch shards across TensorCores; the time axis carries the causal
            # halo in scratch, so it must stay sequential ("arbitrary").
            dimension_semantics=("parallel", "arbitrary"),
            # Above v5e's 16 MiB scoped default; headroom on v7x (64 MiB phys).
            vmem_limit_bytes=48 * 1024 * 1024,
        ),
    )(w2d, b2d, x)


def _reference(x, shared_weight, bias, dilation):
    """Pure-JAX reference matching F.conv1d(expanded weight) + causal slice."""
    B, C_in, L = x.shape
    C_out, _, K = shared_weight.shape
    padding = (K - 1) * dilation
    x_pad = jnp.pad(x, ((0, 0), (0, 0), (padding, 0))).astype(jnp.float32)
    s = jnp.sum(x_pad, axis=1)                                   # (B, Lp)
    out = jnp.broadcast_to(bias.astype(jnp.float32)[None, :, None], (B, C_out, L))
    for k in range(K):
        win = s[:, k * dilation:k * dilation + L]                # (B, L)
        out = out + shared_weight[None, :, 0, k:k + 1].astype(jnp.float32) * win[:, None, :]
    return out.astype(x.dtype)


if __name__ == "__main__":
    # Test 1: module-like small shapes (matches SharedParamConv1d defaults).
    key = jax.random.PRNGKey(0)
    B, C_in, C_out, L = 2, 4, 8, 16
    K, dilation = 3, 2
    kx, kw = jax.random.split(key)
    x = jax.random.normal(kx, (B, C_in, L), dtype=jnp.float32)
    shared_weight = jax.random.normal(kw, (C_out, 1, K), dtype=jnp.float32)  # torch.randn
    bias = jnp.zeros((C_out,), dtype=jnp.float32)                            # torch.zeros

    out = jax.block_until_ready(shared_param_conv1d(x, shared_weight, bias, dilation=dilation))
    ref = _reference(x, shared_weight, bias, dilation)
    assert out.shape == (B, C_out, L)
    assert jnp.allclose(out, ref, atol=1e-5, rtol=1e-5)

    # Test 2: multi-tile path — exercises the cross-tile causal carry and a
    # ragged final time tile (L not a multiple of the 128-lane tile).
    B2, C_in2, C_out2, L2 = 2, 3, 5, 300
    K2, dil2 = 4, 3
    k1, k2 = jax.random.split(jax.random.PRNGKey(0))
    x2 = jax.random.normal(k1, (B2, C_in2, L2), dtype=jnp.float32)
    w2 = jax.random.normal(k2, (C_out2, 1, K2), dtype=jnp.float32)
    b2 = jax.random.normal(jax.random.PRNGKey(1), (C_out2,), dtype=jnp.float32)
    out2 = jax.block_until_ready(
        shared_param_conv1d(x2, w2, b2, dilation=dil2, tile_l=128, chunk_l=128))
    ref2 = _reference(x2, w2, b2, dil2)
    assert out2.shape == (B2, C_out2, L2)
    assert jnp.allclose(out2, ref2, atol=1e-4, rtol=1e-4)

    print("KERNEL_OK")
</pallas_src>

<mosaic_0001>
module attributes {stable_mosaic.version = 11 : i64} {
  func.func @_shared_conv1d_kernel(%arg0: i32, %arg1: i32, %arg2: memref<8x3xf32, #tpu.memory_space<vmem>>, %arg3: memref<8x1xf32, #tpu.memory_space<vmem>>, %arg4: memref<1x4x16xf32, #tpu.memory_space<vmem>>, %arg5: memref<1x8x16xf32, #tpu.memory_space<vmem>>, %arg6: memref<1x144xf32, #tpu.memory_space<vmem>>) attributes {dimension_semantics = [#tpu.dimension_semantics<parallel>, #tpu.dimension_semantics<arbitrary>], iteration_bounds = array<i64: 2, 1>, scalar_prefetch = 0 : i64, scratch_operands = 1 : i64, tpu.core_type = #tpu.core_type<tc>, window_params = [{pipeline_mode = #tpu.pipeline_mode<synchronous>, transform_indices = @transform_0, window_bounds = array<i64: 8, 3>}, {pipeline_mode = #tpu.pipeline_mode<synchronous>, transform_indices = @transform_1, window_bounds = array<i64: 8, 1>}, {transform_indices = @transform_2, window_bounds = array<i64: 1, 4, 16>}, {transform_indices = @transform_3, window_bounds = array<i64: 1, 8, 16>}]} {
    %c0 = arith.constant 0 : index
    %c0_0 = arith.constant 0 : index
    %c0_1 = arith.constant 0 : index
    %0 = vector.load %arg4[%c0, %c0_0, %c0_1] : memref<1x4x16xf32, #tpu.memory_space<vmem>>, vector<1x4x16xf32>
    %1 = vector.shape_cast %0 : vector<1x4x16xf32> to vector<4x16xf32>
    %cst = arith.constant dense<0.000000e+00> : vector<16xf32>
    %2 = vector.multi_reduction <add>, %1, %cst [0] : vector<4x16xf32> to vector<16xf32>
    %3 = vector.shape_cast %2 : vector<16xf32> to vector<1x16xf32>
    %c0_i32 = arith.constant 0 : i32
    %4 = arith.cmpi eq, %arg1, %c0_i32 : i32
    %5 = arith.extui %4 : i1 to i32
    %c0_i32_2 = arith.constant 0 : i32
    %6 = arith.cmpi ne, %5, %c0_i32_2 : i32
    scf.if %6 {
      %cst_18 = arith.constant 0.000000e+00 : f32
      %35 = vector.broadcast %cst_18 : f32 to vector<1x4xf32>
      %c0_19 = arith.constant 0 : index
      %c124_20 = arith.constant 124 : index
      %36 = vector.load %arg6[%c0_19, %c124_20] : memref<1x144xf32, #tpu.memory_space<vmem>>, vector<1x4xf32>
      tpu.vector_store %arg6[%c0_19, %c124_20], %35 {strides = array<i32>} : memref<1x144xf32, #tpu.memory_space<vmem>>, vector<1x4xf32>,
    } else {
    }
    %c0_3 = arith.constant 0 : index
    %c128 = arith.constant 128 : index
    %7 = vector.load %arg6[%c0_3, %c128] : memref<1x144xf32, #tpu.memory_space<vmem>>, vector<1x16xf32>
    tpu.vector_store %arg6[%c0_3, %c128], %3 {strides = array<i32>} : memref<1x144xf32, #tpu.memory_space<vmem>>, vector<1x16xf32>,
    %c0_4 = arith.constant 0 : index
    %c0_5 = arith.constant 0 : index
    %8 = vector.load %arg2[%c0_4, %c0_5] : memref<8x3xf32, #tpu.memory_space<vmem>>, vector<8x3xf32>
    %c0_6 = arith.constant 0 : index
    %c0_7 = arith.constant 0 : index
    %9 = vector.load %arg3[%c0_6, %c0_7] : memref<8x1xf32, #tpu.memory_space<vmem>>, vector<8x1xf32>
    %10 = vector.shape_cast %9 : vector<8x1xf32> to vector<8x1xf32>
    %11 = vector.broadcast %10 : vector<8x1xf32> to vector<8x16xf32>
    %c0_8 = arith.constant 0 : index
    %c124 = arith.constant 124 : index
    %12 = vector.load %arg6[%c0_8, %c124] : memref<1x144xf32, #tpu.memory_space<vmem>>, vector<1x16xf32>
    %13 = vector.extract_strided_slice %8 {offsets = [0, 0], sizes = [8, 1], strides = [1, 1]} : vector<8x3xf32> to vector<8x1xf32>
    %14 = vector.broadcast %13 : vector<8x1xf32> to vector<8x16xf32>
    %15 = vector.broadcast %12 : vector<1x16xf32> to vector<8x16xf32>
    %16 = arith.mulf %14, %15 : vector<8x16xf32>
    %17 = arith.addf %11, %16 : vector<8x16xf32>
    %c0_9 = arith.constant 0 : index
    %c126 = arith.constant 126 : index
    %18 = vector.load %arg6[%c0_9, %c126] : memref<1x144xf32, #tpu.memory_space<vmem>>, vector<1x16xf32>
    %19 = vector.extract_strided_slice %8 {offsets = [0, 1], sizes = [8, 1], strides = [1, 1]} : vector<8x3xf32> to vector<8x1xf32>
    %20 = vector.broadcast %19 : vector<8x1xf32> to vector<8x16xf32>
    %21 = vector.broadcast %18 : vector<1x16xf32> to vector<8x16xf32>
    %22 = arith.mulf %20, %21 : vector<8x16xf32>
    %23 = arith.addf %17, %22 : vector<8x16xf32>
    %c0_10 = arith.constant 0 : index
    %c128_11 = arith.constant 128 : index
    %24 = vector.load %arg6[%c0_10, %c128_11] : memref<1x144xf32, #tpu.memory_space<vmem>>, vector<1x16xf32>
    %25 = vector.extract_strided_slice %8 {offsets = [0, 2], sizes = [8, 1], strides = [1, 1]} : vector<8x3xf32> to vector<8x1xf32>
    %26 = vector.broadcast %25 : vector<8x1xf32> to vector<8x16xf32>
    %27 = vector.broadcast %24 : vector<1x16xf32> to vector<8x16xf32>
    %28 = arith.mulf %26, %27 : vector<8x16xf32>
    %29 = arith.addf %23, %28 : vector<8x16xf32>
    %c0_12 = arith.constant 0 : index
    %c0_13 = arith.constant 0 : index
    %c0_14 = arith.constant 0 : index
    %30 = vector.load %arg5[%c0_12, %c0_13, %c0_14] : memref<1x8x16xf32, #tpu.memory_space<vmem>>, vector<1x8x16xf32>
    %31 = vector.shape_cast %30 : vector<1x8x16xf32> to vector<8x16xf32>
    %32 = vector.shape_cast %29 : vector<8x16xf32> to vector<1x8x16xf32>
    tpu.vector_store %arg5[%c0_12, %c0_13, %c0_14], %32 {strides = array<i32>} : memref<1x8x16xf32, #tpu.memory_space<vmem>>, vector<1x8x16xf32>,
    %c0_15 = arith.constant 0 : index
    %c140 = arith.constant 140 : index
    %33 = vector.load %arg6[%c0_15, %c140] : memref<1x144xf32, #tpu.memory_space<vmem>>, vector<1x4xf32>
    %c0_16 = arith.constant 0 : index
    %c124_17 = arith.constant 124 : index
    %34 = vector.load %arg6[%c0_16, %c124_17] : memref<1x144xf32, #tpu.memory_space<vmem>>, vector<1x4xf32>
    tpu.vector_store %arg6[%c0_16, %c124_17], %33 {strides = array<i32>} : memref<1x144xf32, #tpu.memory_space<vmem>>, vector<1x4xf32>,
    return
  }
  func.func @transform_0(%arg0: i32, %arg1: i32) -> (i32, i32) {
    %c0_i32 = arith.constant 0 : i32
    %c0_i32_0 = arith.constant 0 : i32
    %c0_i32_1 = arith.constant 0 : i32
    return %c0_i32, %c0_i32_0 : i32, i32
  }
  func.func @transform_1(%arg0: i32, %arg1: i32) -> (i32, i32) {
    %c0_i32 = arith.constant 0 : i32
    %c0_i32_0 = arith.constant 0 : i32
    %c0_i32_1 = arith.constant 0 : i32
    return %c0_i32, %c0_i32_0 : i32, i32
  }
  func.func @transform_2(%arg0: i32, %arg1: i32) -> (i32, i32, i32) {
    %c0_i32 = arith.constant 0 : i32
    %c0_i32_0 = arith.constant 0 : i32
    return %arg0, %c0_i32, %arg1 : i32, i32, i32
  }
  func.func @transform_3(%arg0: i32, %arg1: i32) -> (i32, i32, i32) {
    %c0_i32 = arith.constant 0 : i32
    %c0_i32_0 = arith.constant 0 : i32
    return %arg0, %c0_i32, %arg1 : i32, i32, i32
  }
}

</mosaic_0001>

<llo_original>
// kernel: tpu_custom_call.1
$region0: #{tpu_custom_call.1}
  #allocation0 [shape = 'u32[]', space=smem, size = 0x4, offset = 0x4, fixed_abs, tag = 'smem constant byte address 0x4 - core index']
  #allocation1 [shape = 'u32[144,128]{1,0:T(1,128)}', space=vmem, size = 0x12000, scoped, tag = 'internal scratch']
  #allocation2 [shape = 'f32[1,144]{1,0:T(1,128)}', space=vmem, size = 0x400, scoped, tag = 'scratch operand']
  %s0 = inlined_call_operand.vmem [shape: f32[8,3], index: 0, kind: input, shape index: {}]
  %s1 = inlined_call_operand.vmem [shape: f32[8,1], index: 1, kind: input, shape index: {}]
  %s2 = inlined_call_operand.vmem [shape: f32[2,4,16], index: 2, kind: input, shape index: {}]
  %s3 = inlined_call_operand.hbm [shape: f32[2,8,16], index: 3, kind: output, shape index: {}]
  %s4 = sld [smem:[#allocation0]]
  $region49: #{tpu_custom_call.1} parent=0
    _
  %s6 = ssub.s32 1, %s4
  %s7 = scalar_select 0, %s6, %s4
  $region1: #{tpu_custom_call.1} parent=0
    #allocation3 [shape = 'u8[8192]{0}', space=vmem, size = 0x2000, scoped, tag = 'output window, operand 0']
    #allocation4 [shape = 's32[2]{0}', space=sflag, size = 0x8, scoped, tag = 'scoped memory for tpu_custom_call.1']
    %8 = vsyncpa [#allocation4], 0
    %s9 = scalar_lea.sflag [#allocation4], 1
    %10 = vsyncpa %s9, 0
    loop: start=0, step=1, limit=4
    $region2: #{tpu_custom_call.1} parent=1 // loop_pre_header
      _
    $region3: #{tpu_custom_call.1} parent=1 // loop_header
      %s12 = sphi 0, %s16
      %p13 = scmp.ge.s32.totalorder %s12, 4
      %s19 = sphi 0, %s31
      %s20 = sphi 0, %s27
      %s21 = sphi 0, %s19
      %s22 = sphi 0, %s20
      %s23 = sphi 0, %s21
      %s24 = sphi 0, %s22
      %s32 = sphi 0, %s32
      %s34 = sphi 0, %s32
      %s35 = sphi 0, %s34
      %s49 = sphi 0, %s35
      %s53 = sphi 0, %s53
      %s55 = sphi 0, %s53
      %s56 = sphi 0, %s55
      %s70 = sphi 0, %s56
      %s78 = sphi 0, %s80
      %s81 = sphi 0, %s78
      %s82 = sphi 0, %s81
      %s98 = sphi 0, %s82
      %s106 = sphi 0, %s108
      %s109 = sphi 0, %s106
      %s110 = sphi 0, %s109
      %s126 = sphi 0, %s110
    $region4: #{tpu_custom_call.1} parent=1 // loop_header_branch
      %15 = sbr.rel (%p13) target = $region8
    $region5: #{tpu_custom_call.1} parent=1 // loop_body
      %s17 = ssub.s32 %s12, 1
      %s18 = ssub.s32 %s12, 2
      %s25 = sadd.s32 1, %s20
      %p26 = scmp.ge.s32.totalorder %s25, 1
      %s27 = scalar_select %p26, 0, %s25
      %s28 = sadd.s32 1, %s19
      %s29 = scalar_select %p26, %s28, %s19
      %p30 = scmp.ge.s32.totalorder %s29, 2
      %s31 = scalar_select %p30, 0, %s29
      %s33 = sadd.s32 %s32, 1
      %p36 = scmp.eq.s32.totalorder %s12, 1
      %p37 = scmp.ne.s32.totalorder %s32, %s34
      %p38 = scmp.eq.s32.totalorder %s12, 0
      %p39 = por %p37, %p38
      %p40 = scmp.ne.s32.totalorder %s32, %s34
      %p41 = scmp.eq.s32.totalorder %s17, 1
      %p42 = por %p40, %p41
      %p43 = scmp.ne.s32.totalorder %s34, %s35
      %p44 = scmp.eq.s32.totalorder %s17, 0
      %p45 = por %p43, %p44
      %p46 = scmp.ne.s32.totalorder %s34, %s35
      %p47 = scmp.eq.s32.totalorder %s18, 1
      %p48 = por %p46, %p47
      %p50 = scmp.ne.s32.totalorder %s35, %s49
      %p51 = scmp.eq.s32.totalorder %s18, 0
      %p52 = por %p50, %p51
      %s54 = sadd.s32 %s53, 1
      %p57 = scmp.eq.s32.totalorder %s12, 1
      %p58 = scmp.ne.s32.totalorder %s53, %s55
      %p59 = scmp.eq.s32.totalorder %s12, 0
      %p60 = por %p58, %p59
      %p61 = scmp.ne.s32.totalorder %s53, %s55
      %p62 = scmp.eq.s32.totalorder %s17, 1
      %p63 = por %p61, %p62
      %p64 = scmp.ne.s32.totalorder %s55, %s56
      %p65 = scmp.eq.s32.totalorder %s17, 0
      %p66 = por %p64, %p65
      %p67 = scmp.ne.s32.totalorder %s55, %s56
      %p68 = scmp.eq.s32.totalorder %s18, 1
      %p69 = por %p67, %p68
      %p71 = scmp.ne.s32.totalorder %s56, %s70
      %p72 = scmp.eq.s32.totalorder %s18, 0
      %p73 = por %p71, %p72
      %s74 = ssub.s32 %s19, %s31
      %s75 = ssub.s32 %s20, %s27
      %s76 = sor.u32 %s74, %s75
      %p77 = scmp.eq.s32.totalorder %s76, 0
      %s79 = sadd.s32 %s78, 1
      %s80 = scalar_select %p77, %s78, %s79
      %p83 = pneg %p77
      %p84 = scmp.eq.s32.totalorder %s12, 1
      %p85 = por %p83, %p84
      %p86 = scmp.ne.s32.totalorder %s78, %s81
      %p87 = scmp.eq.s32.totalorder %s12, 0
      %p88 = por %p86, %p87
      %p89 = scmp.ne.s32.totalorder %s78, %s81
      %p90 = scmp.eq.s32.totalorder %s17, 1
      %p91 = por %p89, %p90
      %p92 = scmp.ne.s32.totalorder %s81, %s82
      %p93 = scmp.eq.s32.totalorder %s17, 0
      %p94 = por %p92, %p93
      %p95 = scmp.ne.s32.totalorder %s81, %s82
      %p96 = scmp.eq.s32.totalorder %s18, 1
      %p97 = por %p95, %p96
      %p99 = scmp.ne.s32.totalorder %s82, %s98
      %p100 = scmp.eq.s32.totalorder %s18, 0
      %p101 = por %p99, %p100
      %s102 = ssub.s32 %s19, %s31
      %s103 = ssub.s32 %s20, %s27
      %s104 = sor.u32 %s102, %s103
      %p105 = scmp.eq.s32.totalorder %s104, 0
      %s107 = sadd.s32 %s106, 1
      %s108 = scalar_select %p105, %s106, %s107
      %p111 = pneg %p105
      %p112 = scmp.eq.s32.totalorder %s12, 1
      %p113 = por %p111, %p112
      %p114 = scmp.ne.s32.totalorder %s106, %s109
      %p115 = scmp.eq.s32.totalorder %s12, 0
      %p116 = por %p114, %p115
      %p117 = scmp.ne.s32.totalorder %s106, %s109
      %p118 = scmp.eq.s32.totalorder %s17, 1
      %p119 = por %p117, %p118
      %p120 = scmp.ne.s32.totalorder %s109, %s110
      %p121 = scmp.eq.s32.totalorder %s17, 0
      %p122 = por %p120, %p121
      %p123 = scmp.ne.s32.totalorder %s109, %s110
      %p124 = scmp.eq.s32.totalorder %s18, 1
      %p125 = por %p123, %p124
      %p127 = scmp.ne.s32.totalorder %s110, %s126
      %p128 = scmp.eq.s32.totalorder %s18, 0
      %p129 = por %p127, %p128
      %p130 = scmp.le.s32.totalorder 1, %s12
      %p131 = scmp.lt.s32.totalorder %s12, 3
      %p132 = pnand %p130, %p131
      %p133 = pneg %p132
      // Predicated region
      $region9: #{tpu_custom_call.1} parent=5 // pred_check
        _
      $region10: #{tpu_custom_call.1} parent=5 // pred_check_branch
        %135 = sbr.rel (%p132) target = $region12
      $region11: #{tpu_custom_call.1} parent=5 // pred_region
        %s136 = ssub.s32 %s12, 1
        // Predicated region
        $region13: #{tpu_custom_call.1} parent=11 // pred_check
          %p137 = pneg %p45
        $region14: #{tpu_custom_call.1} parent=11 // pred_check_branch
          %139 = sbr.rel (%p137) target = $region16
        $region15: #{tpu_custom_call.1} parent=11 // pred_region
          _
        $region16: #{tpu_custom_call.1} parent=11 // pred_fallthru
          _
        // Predicated region
        $region17: #{tpu_custom_call.1} parent=11 // pred_check
          %p140 = pneg %p66
        $region18: #{tpu_custom_call.1} parent=11 // pred_check_branch
          %142 = sbr.rel (%p140) target = $region20
        $region19: #{tpu_custom_call.1} parent=11 // pred_region
          _
        $region20: #{tpu_custom_call.1} parent=11 // pred_fallthru
          _
      $region12: #{tpu_custom_call.1} parent=5 // pred_fallthru
        _
      %p143 = scmp.lt.s32.totalorder %s12, 2
      // Predicated region
      $region21: #{tpu_custom_call.1} parent=5 // pred_check
        %p144 = pneg %p143
      $region22: #{tpu_custom_call.1} parent=5 // pred_check_branch
        %146 = sbr.rel (%p144) target = $region24
      $region23: #{tpu_custom_call.1} parent=5 // pred_region
        // Predicated region
        $region25: #{tpu_custom_call.1} parent=23 // pred_check
          %p147 = pneg %p88
        $region26: #{tpu_custom_call.1} parent=23 // pred_check_branch
          %149 = sbr.rel (%p147) target = $region28
        $region27: #{tpu_custom_call.1} parent=23 // pred_region
          %p150 = scmp.lt.s32.totalorder %s19, 1
          %s151 = scalar_select %p150, %s19, 1
          %p152 = scmp.lt.s32.totalorder %s20, 0
          %s153 = scalar_select %p152, %s20, 0
          %s154 = sadd.s32 %s153, %s151
          %s155 = smul.addr %s154, 4
          %s156 = scalar_lea.vmem %s2, %s155
        $region28: #{tpu_custom_call.1} parent=23 // pred_fallthru
          _
      $region24: #{tpu_custom_call.1} parent=5 // pred_fallthru
        _
      %p157 = scmp.le.s32.totalorder 1, %s12
      %p158 = scmp.lt.s32.totalorder %s12, 3
      %p159 = pnand %p157, %p158
      %p160 = pneg %p159
      // Predicated region
      $region29: #{tpu_custom_call.1} parent=5 // pred_check
        _
      $region30: #{tpu_custom_call.1} parent=5 // pred_check_branch
        %162 = sbr.rel (%p159) target = $region32
      $region31: #{tpu_custom_call.1} parent=5 // pred_region
        %s163 = ssub.s32 %s12, 1
        %p164 = pneg %p45
        %p165 = pneg %p42
        %p166 = pneg %p66
        %p167 = pneg %p63
        %p168 = scmp.lt.s32.totalorder %s21, 1
        %s169 = scalar_select %p168, %s21, 1
        %p170 = scmp.lt.s32.totalorder %s22, 0
        %s171 = scalar_select %p170, %s22, 0
        %s172 = sadd.s32 %s171, %s169
        %s173 = smul.addr %s172, 4
        %s174 = scalar_lea.vmem %s2, %s173
        %p175 = pneg %p94
        %p176 = pneg %p91
        %p177 = pneg %p122
        %p178 = pneg %p119
        %s179 = sand.u32 %s109, 1
        %s180 = scalar_lea.sflag [#allocation4], %s179
        %s181 = sand.u32 %s109, 1
        %s182 = smul.addr %s181, 8
        %s183 = scalar_lea.vmem [#allocation3], %s182
        %p184 = scmp.lt.s32.totalorder %s21, 1
        %s185 = scalar_select %p184, %s21, 1
        %p186 = scmp.lt.s32.totalorder %s22, 0
        %s187 = scalar_select %p186, %s22, 0
        %s188 = sadd.s32 %s187, %s185
        %s189 = smul.addr %s188, 4
        %s190 = scalar_lea.vmem %s2, %s189
        %v191 = vld [vmem:[%s190] sm:$0xf]
        %vm192 = vcmask 125952
        %v193 = vsel %vm192, %v191, 0.0
        %v194 = vrot.slane %v193, 4
        %v195 = vadd.f32 %v193, %v194
        %v196 = vrot.slane %v195, 2
        %v197 = vadd.f32 %v195, %v196
        %v198 = vrot.slane %v197, 1
        %v199 = vadd.f32 %v197, %v198
        %p200 = scmp.eq.s32.totalorder %s22, 0
        // Predicated region
        $region33: #{tpu_custom_call.1} parent=31 // pred_check
          %p201 = pneg %p200
        $region34: #{tpu_custom_call.1} parent=31 // pred_check_branch
          %203 = sbr.rel (%p201) target = $region36
        $region35: #{tpu_custom_call.1} parent=31 // pred_region
          %v204 = vlaneseq
          %vm205 = vcmp.ge.s32.totalorder %v204, 124
          %vm206 = vcmp.lt.s32.totalorder %v204, 128
          %vm207 = vmand %vm205, %vm206
          %208 = vst.msk [vmem:[#allocation2] sm:$0x1] %vm207, 0.0
        $region36: #{tpu_custom_call.1} parent=31 // pred_fallthru
          _
        %v209 = vlaneseq
        %vm210 = vcmp.ge.s32.totalorder %v209, 0
        %vm211 = vcmp.lt.s32.totalorder %v209, 16
        %vm212 = vmand %vm210, %vm211
        %213 = vst.msk [vmem:[#allocation2 + $0x1] sm:$0x1] %vm212, %v199
        %v214 = vld [vmem:[%s0] sm:$0xff]
        %v215 = vld [vmem:[%s1] sm:$0xff]
        %217 = vset.pattern.permute.xlu0 0
        %218 = vperm.xlu0 %217, %v215
        %v219 = vpop.permute.xlu0 %218
        %v221 = vld [vmem:[#allocation2] sm:$0x3]
        %223 = vset.pattern.permute.xlu0 0
        %224 = vperm.xlu0 %223, %v214
        %v225 = vpop.permute.xlu0 %224
        %v228 = vlaneseq
        %v229 = vshrl.u32 %v228, 7
        %v230 = vsub.s32 0, %v229
        %v231 = vrot.slane %v221, %v230
        %v232 = vlaneseq
        %v233 = vshrl.u32 %v232, 7
        %v234 = vsub.s32 1, %v233
        %v235 = vrot.slane %v221, %v234
        %v238 = vmul.f32 %v225, %v231
        %v239 = vmul.f32 %v225, %v235
        %v240 = vadd.f32 %v219, %v238
        %v241 = vadd.f32 %v219, %v239
        %242 = vset.pattern.permute.xlu0 1
        %243 = vperm.xlu0 %242, %v214
        %v244 = vpop.permute.xlu0 %243
        %v246 = vmul.f32 %v244, %v231
        %v247 = vmul.f32 %v244, %v235
        %250 = vrot.lane.b32.xlu0 %v246, 126
        %v251 = vpop.permute.xlu0 %250
        %252 = vrot.lane.b32.xlu0 %v247, 126
        %v253 = vpop.permute.xlu0 %252
        %vm254 = vcmask 1031168
        %v255 = vsel %vm254, %v251, %v253
        %v258 = vadd.f32 %v240, %v255
        %v259 = vadd.f32 %v241, %v253
        %v260 = vld [vmem:[#allocation2 + $0x1] sm:$0x1]
        %261 = vset.pattern.permute.xlu0 2
        %262 = vperm.xlu0 %261, %v214
        %v263 = vpop.permute.xlu0 %262
        %v266 = vlaneseq
        %v267 = vshrl.u32 %v266, 7
        %v268 = vsub.s32 0, %v267
        %v269 = vrot.slane %v260, %v268
        %v271 = vmul.f32 %v263, %v269
        %273 = vrot.lane.b32.xlu0 %v271, 124
        %v274 = vpop.permute.xlu0 %273
        %v276 = vadd.f32 %v258, %v274
        %v277 = vadd.f32 %v259, %v274
        %280 = vrot.lane.b32.xlu0 %v276, 4
        %v281 = vpop.permute.xlu0 %280
        %282 = vrot.lane.b32.xlu0 %v277, 4
        %v283 = vpop.permute.xlu0 %282
        %vm284 = vcmask 31744
        %v285 = vsel %vm284, %v281, %v283
        %vm287 = vcmask 130048
        %288 = vst.msk [vmem:[%s183] sm:$0xff] %vm287, %v285
        %v289 = vld [vmem:[#allocation2 + $0x1] sm:$0x1]
        %291 = vrot.lane.b32.xlu0 %v289, 112
        %v292 = vpop.permute.xlu0 %291
        %vm294 = vcmp.ge.s32.totalorder %v209, 124
        %vm295 = vcmp.lt.s32.totalorder %v209, 128
        %vm296 = vmand %vm294, %vm295
        %297 = vst.msk [vmem:[#allocation2] sm:$0x1] %vm296, %v292
        %s298 = sand.u32 %s109, 1
        %s299 = scalar_lea.sflag [#allocation4], %s298
        %s300 = sand.u32 %s109, 1
        %s301 = smul.addr %s300, 8
        %s302 = scalar_lea.vmem [#allocation3], %s301
        // Predicated region
        $region37: #{tpu_custom_call.1} parent=31 // pred_check
          %p303 = pneg %p119
        $region38: #{tpu_custom_call.1} parent=31 // pred_check_branch
          %305 = sbr.rel (%p303) target = $region40
        $region39: #{tpu_custom_call.1} parent=31 // pred_region
          %s307 = ssub.s32 128, 128
          %308 = vsyncadd %s299, %s307
          %s309 = sadd.s32 %s22, %s21
          %s310 = smul.addr %s309, 128
          %s311 = scalar_lea.hbm %s3, %s310
          %s313 = sshll.u32 %s302, 4
          %s314 = int_to_ptr.vmem [resolvable:$true] %s313
          %316 = dma.vmem_to_hbm [thread:$0]  %s314, 128, %s311, %s299
        $region40: #{tpu_custom_call.1} parent=31 // pred_fallthru
          _
      $region32: #{tpu_custom_call.1} parent=5 // pred_fallthru
        _
      %p317 = scmp.le.s32.totalorder 2, %s12
      // Predicated region
      $region41: #{tpu_custom_call.1} parent=5 // pred_check
        %p318 = pneg %p317
      $region42: #{tpu_custom_call.1} parent=5 // pred_check_branch
        %320 = sbr.rel (%p318) target = $region44
      $region43: #{tpu_custom_call.1} parent=5 // pred_region
        %s321 = ssub.s32 %s12, 2
        // Predicated region
        $region45: #{tpu_custom_call.1} parent=43 // pred_check
          %p322 = pneg %p125
        $region46: #{tpu_custom_call.1} parent=43 // pred_check_branch
          %324 = sbr.rel (%p322) target = $region48
        $region47: #{tpu_custom_call.1} parent=43 // pred_region
          %s325 = sand.u32 %s110, 1
          %s326 = scalar_lea.sflag [#allocation4], %s325
          %s327 = sand.u32 %s110, 1
          %s328 = smul.addr %s327, 8
          %s329 = scalar_lea.vmem [#allocation3], %s328
          %330 = dma.done %s326, 128
        $region48: #{tpu_custom_call.1} parent=43 // pred_fallthru
          _
      $region44: #{tpu_custom_call.1} parent=5 // pred_fallthru
        _
    $region6: #{tpu_custom_call.1} parent=1 // loop_footer
      %s16 = sadd.s32 1, %s12
    $region7: #{tpu_custom_call.1} parent=1 // loop_footer_branch
      %11 = sbr.rel target = $region3
    $region8: #{tpu_custom_call.1} parent=1 // loop_exit
      _
    %331 = vsyncpa [#allocation4], 1
    %s332 = scalar_lea.sflag [#allocation4], 1
    %333 = vsyncpa %s332, 1

</llo_original>
